<compile_context>
chip_gen: v7x
topology: tpu7x:2x2x1
jax: 0.10.0
libtpu: 0.0.40
codegen_flags: <defaults>
</compile_context>

<pallas_src>
import functools

import jax
import jax.numpy as jnp
from jax.experimental import pallas as pl
from jax.experimental.pallas import tpu as pltpu


def pose_geo_kernel(xyz_ref, x_ref, scale_ref, phase_ref, o_ref, *,
                    in_dim, two_feat):
    # xyz_ref: (1, in_dim, tn), x_ref / o_ref: (1, out_dim, tn)
    # scale_ref / phase_ref: (out_dim, 1) f32 constants.
    xyz = xyz_ref[0].astype(jnp.float32)              # (in_dim, tn)

    # Unrolled loop over the (tiny) in_dim; each iteration handles one
    # two_feat-row slab (two_feat == 8 for Point-PN defaults -> one sublane
    # group), written back exactly once with a lane-dense store.
    for d in range(in_dim):
        lo = d * two_feat
        hi = lo + two_feat
        row = xyz[d:d + 1, :]                          # (1, tn)
        scale_d = scale_ref[lo:hi, :]                  # (two_feat, 1)
        phase_d = phase_ref[lo:hi, :]                  # (two_feat, 1)
        # cos(x) == sin(x + pi/2): one transcendental per element, no select.
        pos = jnp.sin(row * scale_d + phase_d)         # (two_feat, tn)
        x = x_ref[0, lo:hi, :].astype(jnp.float32)     # (two_feat, tn)
        o_ref[0, lo:hi, :] = ((x + pos) * pos).astype(o_ref.dtype)


def _pick_tile(n, cap=2048):
    """Largest multiple of 128 that divides n and is <= cap (else full n)."""
    best = None
    t = 128
    while t <= min(n, cap):
        if n % t == 0:
            best = t
        t += 128
    return best if best is not None else n


def pose_geo(knn_xyz, knn_x, alpha, beta, *, tn=None):
    B, in_dim, G, K = knn_xyz.shape
    _, out_dim, _, _ = knn_x.shape
    feat_dim = out_dim // (in_dim * 2)
    two_feat = 2 * feat_dim
    assert out_dim == in_dim * two_feat, "out_dim must equal in_dim * 2 * feat_dim"
    N = G * K
    if tn is None:
        tn = _pick_tile(N)
    assert N % tn == 0, "tn must divide G*K"

    # Free reshapes; no dtype conversion in the wrapper (kernel handles upcast).
    xyz = knn_xyz.reshape(B, in_dim, N)
    x = knn_x.reshape(B, out_dim, N)

    # Tiny per-channel constants (glue): multiplier and sin-phase.
    feat_range = jnp.arange(feat_dim, dtype=jnp.float32)
    dim_embed = jnp.power(jnp.float32(alpha), feat_range / feat_dim)   # (F,)
    per_dim_scale = jnp.tile(jnp.float32(beta) / dim_embed, (2,))      # (2F,)
    scale = jnp.tile(per_dim_scale, (in_dim,)).reshape(out_dim, 1)
    per_dim_phase = jnp.concatenate(
        [jnp.zeros((feat_dim,), jnp.float32),
         jnp.full((feat_dim,), jnp.pi / 2, jnp.float32)])              # (2F,)
    phase = jnp.tile(per_dim_phase, (in_dim,)).reshape(out_dim, 1)

    kernel = functools.partial(pose_geo_kernel, in_dim=in_dim, two_feat=two_feat)
    out = pl.pallas_call(
        kernel,
        out_shape=jax.ShapeDtypeStruct((B, out_dim, N), knn_x.dtype),
        grid=(B, N // tn),
        in_specs=[
            pl.BlockSpec((1, in_dim, tn), lambda b, n: (b, 0, n)),
            pl.BlockSpec((1, out_dim, tn), lambda b, n: (b, 0, n)),
            pl.BlockSpec((out_dim, 1), lambda b, n: (0, 0)),
            pl.BlockSpec((out_dim, 1), lambda b, n: (0, 0)),
        ],
        out_specs=pl.BlockSpec((1, out_dim, tn), lambda b, n: (b, 0, n)),
        compiler_params=pltpu.CompilerParams(
            dimension_semantics=("parallel", "parallel")),
    )(xyz, x, scale, phase)
    return out.reshape(B, out_dim, G, K)


def pose_geo_ref(knn_xyz, knn_x, alpha, beta):
    """Pure-JAX reference that mirrors the PyTorch forward exactly."""
    B, in_dim, G, K = knn_xyz.shape
    out_dim = knn_x.shape[1]
    feat_dim = out_dim // (in_dim * 2)
    feat_range = jnp.arange(feat_dim, dtype=jnp.float32)
    dim_embed = jnp.power(jnp.float32(alpha), feat_range / feat_dim)
    div_embed = (beta * knn_xyz[..., None]) / dim_embed          # (B, in_dim, G, K, F)
    sin_embed = jnp.sin(div_embed)
    cos_embed = jnp.cos(div_embed)
    position_embed = jnp.concatenate([sin_embed, cos_embed], -1)  # (B, in_dim, G, K, 2F)
    position_embed = jnp.transpose(position_embed, (0, 1, 4, 2, 3))
    position_embed = position_embed.reshape(B, out_dim, G, K)
    knn_x_w = knn_x + position_embed
    knn_x_w = knn_x_w * position_embed
    return knn_x_w


if __name__ == "__main__":
    key = jax.random.PRNGKey(0)
    k1, k2 = jax.random.split(key)

    B, in_dim, G, K = 2, 3, 16, 16       # N = G*K = 256 lanes
    out_dim = 24                          # feat_dim = out_dim // (in_dim*2) = 4
    alpha, beta = 1000.0, 100.0           # Point-PN defaults

    knn_xyz = jax.random.uniform(k1, (B, in_dim, G, K), jnp.float32,
                                 minval=-1.0, maxval=1.0)
    knn_x = jax.random.normal(k2, (B, out_dim, G, K), jnp.float32)

    out = pose_geo(knn_xyz, knn_x, alpha, beta)
    out = jax.block_until_ready(out)

    ref = pose_geo_ref(knn_xyz, knn_x, alpha, beta)
    assert out.shape == (B, out_dim, G, K)
    assert jnp.allclose(out, ref, rtol=1e-3, atol=1e-3), "mismatch vs reference"

    print("KERNEL_OK")
</pallas_src>

<mosaic_0001>
module attributes {stable_mosaic.version = 11 : i64} {
  func.func @pose_geo_kernel(%arg0: i32, %arg1: i32, %arg2: memref<1x3x256xf32, #tpu.memory_space<vmem>>, %arg3: memref<1x24x256xf32, #tpu.memory_space<vmem>>, %arg4: memref<24x1xf32, #tpu.memory_space<vmem>>, %arg5: memref<24x1xf32, #tpu.memory_space<vmem>>, %arg6: memref<1x24x256xf32, #tpu.memory_space<vmem>>) attributes {dimension_semantics = [#tpu.dimension_semantics<parallel>, #tpu.dimension_semantics<parallel>], iteration_bounds = array<i64: 2, 1>, scalar_prefetch = 0 : i64, scratch_operands = 0 : i64, tpu.core_type = #tpu.core_type<tc>, window_params = [{transform_indices = @transform_0, window_bounds = array<i64: 1, 3, 256>}, {transform_indices = @transform_1, window_bounds = array<i64: 1, 24, 256>}, {pipeline_mode = #tpu.pipeline_mode<synchronous>, transform_indices = @transform_2, window_bounds = array<i64: 24, 1>}, {pipeline_mode = #tpu.pipeline_mode<synchronous>, transform_indices = @transform_3, window_bounds = array<i64: 24, 1>}, {transform_indices = @transform_4, window_bounds = array<i64: 1, 24, 256>}]} {
    %c0 = arith.constant 0 : index
    %c0_0 = arith.constant 0 : index
    %c0_1 = arith.constant 0 : index
    %0 = vector.load %arg2[%c0, %c0_0, %c0_1] : memref<1x3x256xf32, #tpu.memory_space<vmem>>, vector<1x3x256xf32>
    %1 = vector.shape_cast %0 : vector<1x3x256xf32> to vector<3x256xf32>
    %2 = vector.extract_strided_slice %1 {offsets = [0, 0], sizes = [1, 256], strides = [1, 1]} : vector<3x256xf32> to vector<1x256xf32>
    %c0_2 = arith.constant 0 : index
    %c0_3 = arith.constant 0 : index
    %3 = vector.load %arg4[%c0_2, %c0_3] : memref<24x1xf32, #tpu.memory_space<vmem>>, vector<8x1xf32>
    %c0_4 = arith.constant 0 : index
    %c0_5 = arith.constant 0 : index
    %4 = vector.load %arg5[%c0_4, %c0_5] : memref<24x1xf32, #tpu.memory_space<vmem>>, vector<8x1xf32>
    %5 = vector.broadcast %2 : vector<1x256xf32> to vector<8x256xf32>
    %6 = vector.broadcast %3 : vector<8x1xf32> to vector<8x256xf32>
    %7 = arith.mulf %5, %6 : vector<8x256xf32>
    %8 = vector.broadcast %4 : vector<8x1xf32> to vector<8x256xf32>
    %9 = arith.addf %7, %8 : vector<8x256xf32>
    %10 = math.sin %9 : vector<8x256xf32>
    %c0_6 = arith.constant 0 : index
    %c0_7 = arith.constant 0 : index
    %c0_8 = arith.constant 0 : index
    %11 = vector.load %arg3[%c0_6, %c0_7, %c0_8] : memref<1x24x256xf32, #tpu.memory_space<vmem>>, vector<1x8x256xf32>
    %12 = vector.shape_cast %11 : vector<1x8x256xf32> to vector<8x256xf32>
    %13 = arith.addf %12, %10 : vector<8x256xf32>
    %14 = arith.mulf %13, %10 : vector<8x256xf32>
    %c0_9 = arith.constant 0 : index
    %c0_10 = arith.constant 0 : index
    %c0_11 = arith.constant 0 : index
    %15 = vector.load %arg6[%c0_9, %c0_10, %c0_11] : memref<1x24x256xf32, #tpu.memory_space<vmem>>, vector<1x8x256xf32>
    %16 = vector.shape_cast %15 : vector<1x8x256xf32> to vector<8x256xf32>
    %17 = vector.shape_cast %14 : vector<8x256xf32> to vector<1x8x256xf32>
    tpu.vector_store %arg6[%c0_9, %c0_10, %c0_11], %17 {strides = array<i32>} : memref<1x24x256xf32, #tpu.memory_space<vmem>>, vector<1x8x256xf32>,
    %18 = vector.extract_strided_slice %1 {offsets = [1, 0], sizes = [1, 256], strides = [1, 1]} : vector<3x256xf32> to vector<1x256xf32>
    %c8 = arith.constant 8 : index
    %c0_12 = arith.constant 0 : index
    %19 = vector.load %arg4[%c8, %c0_12] : memref<24x1xf32, #tpu.memory_space<vmem>>, vector<8x1xf32>
    %c8_13 = arith.constant 8 : index
    %c0_14 = arith.constant 0 : index
    %20 = vector.load %arg5[%c8_13, %c0_14] : memref<24x1xf32, #tpu.memory_space<vmem>>, vector<8x1xf32>
    %21 = vector.broadcast %18 : vector<1x256xf32> to vector<8x256xf32>
    %22 = vector.broadcast %19 : vector<8x1xf32> to vector<8x256xf32>
    %23 = arith.mulf %21, %22 : vector<8x256xf32>
    %24 = vector.broadcast %20 : vector<8x1xf32> to vector<8x256xf32>
    %25 = arith.addf %23, %24 : vector<8x256xf32>
    %26 = math.sin %25 : vector<8x256xf32>
    %c0_15 = arith.constant 0 : index
    %c8_16 = arith.constant 8 : index
    %c0_17 = arith.constant 0 : index
    %27 = vector.load %arg3[%c0_15, %c8_16, %c0_17] : memref<1x24x256xf32, #tpu.memory_space<vmem>>, vector<1x8x256xf32>
    %28 = vector.shape_cast %27 : vector<1x8x256xf32> to vector<8x256xf32>
    %29 = arith.addf %28, %26 : vector<8x256xf32>
    %30 = arith.mulf %29, %26 : vector<8x256xf32>
    %c0_18 = arith.constant 0 : index
    %c8_19 = arith.constant 8 : index
    %c0_20 = arith.constant 0 : index
    %31 = vector.load %arg6[%c0_18, %c8_19, %c0_20] : memref<1x24x256xf32, #tpu.memory_space<vmem>>, vector<1x8x256xf32>
    %32 = vector.shape_cast %31 : vector<1x8x256xf32> to vector<8x256xf32>
    %33 = vector.shape_cast %30 : vector<8x256xf32> to vector<1x8x256xf32>
    tpu.vector_store %arg6[%c0_18, %c8_19, %c0_20], %33 {strides = array<i32>} : memref<1x24x256xf32, #tpu.memory_space<vmem>>, vector<1x8x256xf32>,
    %34 = vector.extract_strided_slice %1 {offsets = [2, 0], sizes = [1, 256], strides = [1, 1]} : vector<3x256xf32> to vector<1x256xf32>
    %c16 = arith.constant 16 : index
    %c0_21 = arith.constant 0 : index
    %35 = vector.load %arg4[%c16, %c0_21] : memref<24x1xf32, #tpu.memory_space<vmem>>, vector<8x1xf32>
    %c16_22 = arith.constant 16 : index
    %c0_23 = arith.constant 0 : index
    %36 = vector.load %arg5[%c16_22, %c0_23] : memref<24x1xf32, #tpu.memory_space<vmem>>, vector<8x1xf32>
    %37 = vector.broadcast %34 : vector<1x256xf32> to vector<8x256xf32>
    %38 = vector.broadcast %35 : vector<8x1xf32> to vector<8x256xf32>
    %39 = arith.mulf %37, %38 : vector<8x256xf32>
    %40 = vector.broadcast %36 : vector<8x1xf32> to vector<8x256xf32>
    %41 = arith.addf %39, %40 : vector<8x256xf32>
    %42 = math.sin %41 : vector<8x256xf32>
    %c0_24 = arith.constant 0 : index
    %c16_25 = arith.constant 16 : index
    %c0_26 = arith.constant 0 : index
    %43 = vector.load %arg3[%c0_24, %c16_25, %c0_26] : memref<1x24x256xf32, #tpu.memory_space<vmem>>, vector<1x8x256xf32>
    %44 = vector.shape_cast %43 : vector<1x8x256xf32> to vector<8x256xf32>
    %45 = arith.addf %44, %42 : vector<8x256xf32>
    %46 = arith.mulf %45, %42 : vector<8x256xf32>
    %c0_27 = arith.constant 0 : index
    %c16_28 = arith.constant 16 : index
    %c0_29 = arith.constant 0 : index
    %47 = vector.load %arg6[%c0_27, %c16_28, %c0_29] : memref<1x24x256xf32, #tpu.memory_space<vmem>>, vector<1x8x256xf32>
    %48 = vector.shape_cast %47 : vector<1x8x256xf32> to vector<8x256xf32>
    %49 = vector.shape_cast %46 : vector<8x256xf32> to vector<1x8x256xf32>
    tpu.vector_store %arg6[%c0_27, %c16_28, %c0_29], %49 {strides = array<i32>} : memref<1x24x256xf32, #tpu.memory_space<vmem>>, vector<1x8x256xf32>,
    return
  }
  func.func @transform_0(%arg0: i32, %arg1: i32) -> (i32, i32, i32) {
    %c0_i32 = arith.constant 0 : i32
    %c0_i32_0 = arith.constant 0 : i32
    return %arg0, %c0_i32, %arg1 : i32, i32, i32
  }
  func.func @transform_1(%arg0: i32, %arg1: i32) -> (i32, i32, i32) {
    %c0_i32 = arith.constant 0 : i32
    %c0_i32_0 = arith.constant 0 : i32
    return %arg0, %c0_i32, %arg1 : i32, i32, i32
  }
  func.func @transform_2(%arg0: i32, %arg1: i32) -> (i32, i32) {
    %c0_i32 = arith.constant 0 : i32
    %c0_i32_0 = arith.constant 0 : i32
    %c0_i32_1 = arith.constant 0 : i32
    return %c0_i32, %c0_i32_0 : i32, i32
  }
  func.func @transform_3(%arg0: i32, %arg1: i32) -> (i32, i32) {
    %c0_i32 = arith.constant 0 : i32
    %c0_i32_0 = arith.constant 0 : i32
    %c0_i32_1 = arith.constant 0 : i32
    return %c0_i32, %c0_i32_0 : i32, i32
  }
  func.func @transform_4(%arg0: i32, %arg1: i32) -> (i32, i32, i32) {
    %c0_i32 = arith.constant 0 : i32
    %c0_i32_0 = arith.constant 0 : i32
    return %arg0, %c0_i32, %arg1 : i32, i32, i32
  }
}

</mosaic_0001>

<llo_original>
// kernel: tpu_custom_call.1
$region0: #{tpu_custom_call.1}
  #allocation0 [shape = 'u32[]', space=smem, size = 0x4, offset = 0x4, fixed_abs, tag = 'smem constant byte address 0x4 - core index']
  #allocation1 [shape = 'u32[144,128]{1,0:T(1,128)}', space=vmem, size = 0x12000, scoped, tag = 'internal scratch']
  %s0 = inlined_call_operand.vmem [shape: f32[2,3,256], index: 0, kind: input, shape index: {}]
  %s1 = inlined_call_operand.hbm [shape: f32[2,24,256], index: 1, kind: input, shape index: {}]
  %s2 = inlined_call_operand.vmem [shape: f32[24,1], index: 2, kind: input, shape index: {}]
  %s3 = inlined_call_operand.vmem [shape: f32[24,1], index: 3, kind: input, shape index: {}]
  %s4 = inlined_call_operand.hbm [shape: f32[2,24,256], index: 4, kind: output, shape index: {}]
  %s5 = sld [smem:[#allocation0]]
  $region53: #{tpu_custom_call.1} parent=0
    _
  %s7 = ssub.s32 1, %s5
  %s8 = scalar_select 0, %s7, %s5
  $region1: #{tpu_custom_call.1} parent=0
    #allocation2 [shape = 'u8[49152]{0}', space=vmem, size = 0xc000, scoped, tag = 'input window, operand 1']
    #allocation3 [shape = 's32[2]{0}', space=sflag, size = 0x8, scoped, tag = 'scoped memory for tpu_custom_call.1']
    #allocation4 [shape = 's32[2]{0}', space=sflag, size = 0x8, scoped, tag = 'scoped memory for tpu_custom_call.1']
    #allocation5 [shape = 'u8[49152]{0}', space=vmem, size = 0xc000, scoped, tag = 'output window, operand 0']
    %9 = vsyncpa [#allocation3], 0
    %s10 = scalar_lea.sflag [#allocation3], 1
    %11 = vsyncpa %s10, 0
    %12 = vsyncpa [#allocation4], 0
    %s13 = scalar_lea.sflag [#allocation4], 1
    %14 = vsyncpa %s13, 0
    loop: start=0, step=1, limit=4
    $region2: #{tpu_custom_call.1} parent=1 // loop_pre_header
      _
    $region3: #{tpu_custom_call.1} parent=1 // loop_header
      %s16 = sphi 0, %s20
      %p17 = scmp.ge.s32.totalorder %s16, 4
      %s23 = sphi 0, %s35
      %s24 = sphi 0, %s31
      %s25 = sphi 0, %s23
      %s26 = sphi 0, %s24
      %s27 = sphi 0, %s25
      %s28 = sphi 0, %s26
      %s40 = sphi 0, %s42
      %s43 = sphi 0, %s40
      %s44 = sphi 0, %s43
      %s60 = sphi 0, %s44
      %s68 = sphi 0, %s70
      %s71 = sphi 0, %s68
      %s72 = sphi 0, %s71
      %s88 = sphi 0, %s72
      %s92 = sphi 0, %s92
      %s94 = sphi 0, %s92
      %s95 = sphi 0, %s94
      %s109 = sphi 0, %s95
      %s113 = sphi 0, %s113
      %s115 = sphi 0, %s113
      %s116 = sphi 0, %s115
      %s130 = sphi 0, %s116
      %s138 = sphi 0, %s140
      %s141 = sphi 0, %s138
      %s142 = sphi 0, %s141
      %s158 = sphi 0, %s142
    $region4: #{tpu_custom_call.1} parent=1 // loop_header_branch
      %19 = sbr.rel (%p17) target = $region8
    $region5: #{tpu_custom_call.1} parent=1 // loop_body
      %s21 = ssub.s32 %s16, 1
      %s22 = ssub.s32 %s16, 2
      %s29 = sadd.s32 1, %s24
      %p30 = scmp.ge.s32.totalorder %s29, 1
      %s31 = scalar_select %p30, 0, %s29
      %s32 = sadd.s32 1, %s23
      %s33 = scalar_select %p30, %s32, %s23
      %p34 = scmp.ge.s32.totalorder %s33, 2
      %s35 = scalar_select %p34, 0, %s33
      %s36 = ssub.s32 %s23, %s35
      %s37 = ssub.s32 %s24, %s31
      %s38 = sor.u32 %s36, %s37
      %p39 = scmp.eq.s32.totalorder %s38, 0
      %s41 = sadd.s32 %s40, 1
      %s42 = scalar_select %p39, %s40, %s41
      %p45 = pneg %p39
      %p46 = scmp.eq.s32.totalorder %s16, 1
      %p47 = por %p45, %p46
      %p48 = scmp.ne.s32.totalorder %s40, %s43
      %p49 = scmp.eq.s32.totalorder %s16, 0
      %p50 = por %p48, %p49
      %p51 = scmp.ne.s32.totalorder %s40, %s43
      %p52 = scmp.eq.s32.totalorder %s21, 1
      %p53 = por %p51, %p52
      %p54 = scmp.ne.s32.totalorder %s43, %s44
      %p55 = scmp.eq.s32.totalorder %s21, 0
      %p56 = por %p54, %p55
      %p57 = scmp.ne.s32.totalorder %s43, %s44
      %p58 = scmp.eq.s32.totalorder %s22, 1
      %p59 = por %p57, %p58
      %p61 = scmp.ne.s32.totalorder %s44, %s60
      %p62 = scmp.eq.s32.totalorder %s22, 0
      %p63 = por %p61, %p62
      %s64 = ssub.s32 %s23, %s35
      %s65 = ssub.s32 %s24, %s31
      %s66 = sor.u32 %s64, %s65
      %p67 = scmp.eq.s32.totalorder %s66, 0
      %s69 = sadd.s32 %s68, 1
      %s70 = scalar_select %p67, %s68, %s69
      %p73 = pneg %p67
      %p74 = scmp.eq.s32.totalorder %s16, 1
      %p75 = por %p73, %p74
      %p76 = scmp.ne.s32.totalorder %s68, %s71
      %p77 = scmp.eq.s32.totalorder %s16, 0
      %p78 = por %p76, %p77
      %p79 = scmp.ne.s32.totalorder %s68, %s71
      %p80 = scmp.eq.s32.totalorder %s21, 1
      %p81 = por %p79, %p80
      %p82 = scmp.ne.s32.totalorder %s71, %s72
      %p83 = scmp.eq.s32.totalorder %s21, 0
      %p84 = por %p82, %p83
      %p85 = scmp.ne.s32.totalorder %s71, %s72
      %p86 = scmp.eq.s32.totalorder %s22, 1
      %p87 = por %p85, %p86
      %p89 = scmp.ne.s32.totalorder %s72, %s88
      %p90 = scmp.eq.s32.totalorder %s22, 0
      %p91 = por %p89, %p90
      %s93 = sadd.s32 %s92, 1
      %p96 = scmp.eq.s32.totalorder %s16, 1
      %p97 = scmp.ne.s32.totalorder %s92, %s94
      %p98 = scmp.eq.s32.totalorder %s16, 0
      %p99 = por %p97, %p98
      %p100 = scmp.ne.s32.totalorder %s92, %s94
      %p101 = scmp.eq.s32.totalorder %s21, 1
      %p102 = por %p100, %p101
      %p103 = scmp.ne.s32.totalorder %s94, %s95
      %p104 = scmp.eq.s32.totalorder %s21, 0
      %p105 = por %p103, %p104
      %p106 = scmp.ne.s32.totalorder %s94, %s95
      %p107 = scmp.eq.s32.totalorder %s22, 1
      %p108 = por %p106, %p107
      %p110 = scmp.ne.s32.totalorder %s95, %s109
      %p111 = scmp.eq.s32.totalorder %s22, 0
      %p112 = por %p110, %p111
      %s114 = sadd.s32 %s113, 1
      %p117 = scmp.eq.s32.totalorder %s16, 1
      %p118 = scmp.ne.s32.totalorder %s113, %s115
      %p119 = scmp.eq.s32.totalorder %s16, 0
      %p120 = por %p118, %p119
      %p121 = scmp.ne.s32.totalorder %s113, %s115
      %p122 = scmp.eq.s32.totalorder %s21, 1
      %p123 = por %p121, %p122
      %p124 = scmp.ne.s32.totalorder %s115, %s116
      %p125 = scmp.eq.s32.totalorder %s21, 0
      %p126 = por %p124, %p125
      %p127 = scmp.ne.s32.totalorder %s115, %s116
      %p128 = scmp.eq.s32.totalorder %s22, 1
      %p129 = por %p127, %p128
      %p131 = scmp.ne.s32.totalorder %s116, %s130
      %p132 = scmp.eq.s32.totalorder %s22, 0
      %p133 = por %p131, %p132
      %s134 = ssub.s32 %s23, %s35
      %s135 = ssub.s32 %s24, %s31
      %s136 = sor.u32 %s134, %s135
      %p137 = scmp.eq.s32.totalorder %s136, 0
      %s139 = sadd.s32 %s138, 1
      %s140 = scalar_select %p137, %s138, %s139
      %p143 = pneg %p137
      %p144 = scmp.eq.s32.totalorder %s16, 1
      %p145 = por %p143, %p144
      %p146 = scmp.ne.s32.totalorder %s138, %s141
      %p147 = scmp.eq.s32.totalorder %s16, 0
      %p148 = por %p146, %p147
      %p149 = scmp.ne.s32.totalorder %s138, %s141
      %p150 = scmp.eq.s32.totalorder %s21, 1
      %p151 = por %p149, %p150
      %p152 = scmp.ne.s32.totalorder %s141, %s142
      %p153 = scmp.eq.s32.totalorder %s21, 0
      %p154 = por %p152, %p153
      %p155 = scmp.ne.s32.totalorder %s141, %s142
      %p156 = scmp.eq.s32.totalorder %s22, 1
      %p157 = por %p155, %p156
      %p159 = scmp.ne.s32.totalorder %s142, %s158
      %p160 = scmp.eq.s32.totalorder %s22, 0
      %p161 = por %p159, %p160
      %p162 = scmp.le.s32.totalorder 1, %s16
      %p163 = scmp.lt.s32.totalorder %s16, 3
      %p164 = pnand %p162, %p163
      %p165 = pneg %p164
      // Predicated region
      $region9: #{tpu_custom_call.1} parent=5 // pred_check
        _
      $region10: #{tpu_custom_call.1} parent=5 // pred_check_branch
        %167 = sbr.rel (%p164) target = $region12
      $region11: #{tpu_custom_call.1} parent=5 // pred_region
        %s168 = ssub.s32 %s16, 1
        // Predicated region
        $region13: #{tpu_custom_call.1} parent=11 // pred_check
          %p169 = pneg %p105
        $region14: #{tpu_custom_call.1} parent=11 // pred_check_branch
          %171 = sbr.rel (%p169) target = $region16
        $region15: #{tpu_custom_call.1} parent=11 // pred_region
          _
        $region16: #{tpu_custom_call.1} parent=11 // pred_fallthru
          _
        // Predicated region
        $region17: #{tpu_custom_call.1} parent=11 // pred_check
          %p172 = pneg %p126
        $region18: #{tpu_custom_call.1} parent=11 // pred_check_branch
          %174 = sbr.rel (%p172) target = $region20
        $region19: #{tpu_custom_call.1} parent=11 // pred_region
          _
        $region20: #{tpu_custom_call.1} parent=11 // pred_fallthru
          _
      $region12: #{tpu_custom_call.1} parent=5 // pred_fallthru
        _
      %p175 = scmp.lt.s32.totalorder %s16, 2
      // Predicated region
      $region21: #{tpu_custom_call.1} parent=5 // pred_check
        %p176 = pneg %p175
      $region22: #{tpu_custom_call.1} parent=5 // pred_check_branch
        %178 = sbr.rel (%p176) target = $region24
      $region23: #{tpu_custom_call.1} parent=5 // pred_region
        // Predicated region
        $region25: #{tpu_custom_call.1} parent=23 // pred_check
          %p179 = pneg %p50
        $region26: #{tpu_custom_call.1} parent=23 // pred_check_branch
          %181 = sbr.rel (%p179) target = $region28
        $region27: #{tpu_custom_call.1} parent=23 // pred_region
          %s182 = smul.u32 2, %s24
          %p183 = scmp.lt.s32.totalorder %s23, 1
          %s184 = scalar_select %p183, %s23, 1
          %p185 = scmp.lt.s32.totalorder %s182, 1
          %s186 = scalar_select %p185, %s182, 1
          %s187 = smul.addr %s184, 2
          %s188 = sadd.s32 %s186, %s187
          %s189 = smul.addr %s188, 4
          %s190 = scalar_lea.vmem %s0, %s189
          %s191 = smul.u32 2, %s24
        $region28: #{tpu_custom_call.1} parent=23 // pred_fallthru
          _
        // Predicated region
        $region29: #{tpu_custom_call.1} parent=23 // pred_check
          %p192 = pneg %p78
        $region30: #{tpu_custom_call.1} parent=23 // pred_check_branch
          %194 = sbr.rel (%p192) target = $region32
        $region31: #{tpu_custom_call.1} parent=23 // pred_region
          %s195 = sand.u32 %s68, 1
          %s196 = scalar_lea.sflag [#allocation3], %s195
          %s197 = sand.u32 %s68, 1
          %s198 = smul.addr %s197, 48
          %s199 = scalar_lea.vmem [#allocation2], %s198
          %s200 = smul.u32 2, %s24
          %s202 = ssub.s32 768, 768
          %203 = vsyncadd %s196, %s202
          %s204 = smul.addr %s23, 6
          %s205 = sadd.s32 %s200, %s204
          %s206 = smul.addr %s205, 128
          %s207 = scalar_lea.hbm %s1, %s206
          %s208 = sshll.u32 %s199, 4
          %s209 = int_to_ptr.vmem [resolvable:$true] %s208
          %214 = dma.hbm_to_vmem [thread:$0]  %s207, 768, %s209, %s196, 256, 256, 16
        $region32: #{tpu_custom_call.1} parent=23 // pred_fallthru
          _
      $region24: #{tpu_custom_call.1} parent=5 // pred_fallthru
        _
      %p215 = scmp.le.s32.totalorder 1, %s16
      %p216 = scmp.lt.s32.totalorder %s16, 3
      %p217 = pnand %p215, %p216
      %p218 = pneg %p217
      // Predicated region
      $region33: #{tpu_custom_call.1} parent=5 // pred_check
        _
      $region34: #{tpu_custom_call.1} parent=5 // pred_check_branch
        %220 = sbr.rel (%p217) target = $region36
      $region35: #{tpu_custom_call.1} parent=5 // pred_region
        %s221 = ssub.s32 %s16, 1
        %s222 = sand.u32 %s71, 1
        %s223 = scalar_lea.sflag [#allocation3], %s222
        %s224 = sand.u32 %s71, 1
        %s225 = smul.addr %s224, 48
        %s226 = scalar_lea.vmem [#allocation2], %s225
        // Predicated region
        $region37: #{tpu_custom_call.1} parent=35 // pred_check
          %p227 = pneg %p84
        $region38: #{tpu_custom_call.1} parent=35 // pred_check_branch
          %229 = sbr.rel (%p227) target = $region40
        $region39: #{tpu_custom_call.1} parent=35 // pred_region
          %230 = dma.done %s223, 768
        $region40: #{tpu_custom_call.1} parent=35 // pred_fallthru
          _
        %s231 = smul.u32 2, %s26
        %p232 = scmp.lt.s32.totalorder %s25, 1
        %s233 = scalar_select %p232, %s25, 1
        %p234 = scmp.lt.s32.totalorder %s231, 1
        %s235 = scalar_select %p234, %s231, 1
        %s236 = smul.addr %s233, 2
        %s237 = sadd.s32 %s235, %s236
        %s238 = smul.addr %s237, 4
        %s239 = scalar_lea.vmem %s0, %s238
        %p240 = pneg %p56
        %p241 = pneg %p53
        %s242 = sand.u32 %s71, 1
        %s243 = scalar_lea.sflag [#allocation3], %s242
        %s244 = sand.u32 %s71, 1
        %s245 = smul.addr %s244, 48
        %s246 = scalar_lea.vmem [#allocation2], %s245
        %p247 = pneg %p84
        %p248 = pneg %p81
        %p249 = pneg %p105
        %p250 = pneg %p102
        %p251 = pneg %p126
        %p252 = pneg %p123
        %p253 = pneg %p154
        %p254 = pneg %p151
        %s255 = sand.u32 %s141, 1
        %s256 = scalar_lea.sflag [#allocation4], %s255
        %s257 = sand.u32 %s141, 1
        %s258 = smul.addr %s257, 48
        %s259 = scalar_lea.vmem [#allocation5], %s258
        %s260 = smul.u32 2, %s26
        %p261 = scmp.lt.s32.totalorder %s25, 1
        %s262 = scalar_select %p261, %s25, 1
        %p263 = scmp.lt.s32.totalorder %s260, 1
        %s264 = scalar_select %p263, %s260, 1
        %s265 = smul.addr %s262, 2
        %s266 = sadd.s32 %s264, %s265
        %s267 = smul.addr %s266, 4
        %s268 = scalar_lea.vmem %s0, %s267
        %s269 = smul.u32 2, %s26
        %s270 = smul.u32 2, %s26
        %s271 = smul.u32 2, %s26
        %v272 = vld [vmem:[%s268] sm:$0x77]
        %v273 = vld [vmem:[%s2] sm:$0xff]
        %v274 = vld [vmem:[%s3] sm:$0xff]
        %v276 = vlaneseq
        %v277 = vshrl.u32 %v276, 7
        %v278 = vsub.s32 0, %v277
        %v279 = vrot.slane %v272, %v278
        %v280 = vlaneseq
        %v281 = vshrl.u32 %v280, 7
        %v282 = vsub.s32 4, %v281
        %v283 = vrot.slane %v272, %v282
        %v286 = vlaneseq
        %v287 = vshrl.u32 %v286, 7
        %v288 = vsub.s32 0, %v287
        %v289 = vrot.slane %v279, %v288
        %v290 = vlaneseq
        %v291 = vshrl.u32 %v290, 7
        %v292 = vsub.s32 0, %v291
        %v293 = vrot.slane %v283, %v292
        %295 = vset.pattern.permute.xlu0 0
        %296 = vperm.xlu0 %295, %v273
        %v297 = vpop.permute.xlu0 %296
        %v299 = vmul.f32 %v289, %v297
        %v300 = vmul.f32 %v293, %v297
        %302 = vset.pattern.permute.xlu0 0
        %303 = vperm.xlu0 %302, %v274
        %v304 = vpop.permute.xlu0 %303
        %v306 = vadd.f32 %v299, %v304
        %v307 = vadd.f32 %v300, %v304
        %v308 = vand.u32 2147483647, %v306
        %vm309 = vcmp.le.f32.partialorder %v308, 0.7853982
        %vm310 = vcmp.lt.s32.totalorder %v306, 0
        %v311 = vand.u32 %v306, 2139095040
        %v312 = vshrl.u32 %v311, 23
        %v313 = vsub.s32 %v312, 127
        %v314 = vand.u32 2147483647, %v306
        %v315 = vand.u32 %v314, 8388607
        %v316 = vor.u32 %v315, 8388608
        %v317 = vsub.s32 0, %v316
        %v318 = vadd.s32 %v313, 1
        %vm319 = vcmp.gt.s32.totalorder %v318, 0
        %v320 = vsel %vm319, %v318, 0
        %v321 = vshrl.u32 %v320, 5
        %v322 = vand.u32 %v320, 31
        %v323 = vsub.s32 32, %v322
        %v324 = vshrl.u32 683565275, %v323
        %v325 = vshll.u32 683565275, %v322
        %v326 = vshrl.u32 2475754826, %v323
        %v327 = vor.u32 %v325, %v326
        %v328 = vshll.u32 2475754826, %v322
        %v329 = vshrl.u32 2131351028, %v323
        %v330 = vor.u32 %v328, %v329
        %v331 = vshll.u32 2131351028, %v322
        %v332 = vshrl.u32 2102212464, %v323
        %v333 = vor.u32 %v331, %v332
        %v334 = vshll.u32 2102212464, %v322
        %v335 = vshrl.u32 920167782, %v323
        %v336 = vor.u32 %v334, %v335
        %v337 = vshll.u32 920167782, %v322
        %v338 = vshrl.u32 1326507024, %v323
        %v339 = vor.u32 %v337, %v338
        %vm340 = vcmp.lt.s32.totalorder %v321, 1
        %vm341 = vcmp.lt.s32.totalorder %v321, 2
        %vm342 = vcmp.lt.s32.totalorder %v321, 3
        %vm343 = vcmp.lt.s32.totalorder %v321, 4
        %v344 = vsel %vm340, %v324, %v327
        %v345 = vsel %vm343, %v333, 2102212464
        %v346 = vsel %vm342, %v330, %v345
        %v347 = vsel %vm341, %v344, %v346
        %v348 = vsel %vm340, %v327, %v330
        %v349 = vsel %vm343, %v336, 920167782
        %v350 = vsel %vm342, %v333, %v349
        %v351 = vsel %vm341, %v348, %v350
        %v352 = vsel %vm340, %v330, %v333
        %v353 = vsel %vm343, %v339, 1326507024
        %v354 = vsel %vm342, %v336, %v353
        %v355 = vsel %vm341, %v352, %v354
        %v356 = vshll.u32 %v316, 8
        %v357 = vmul.u32.u64.compose %v356, %v355
        %v358 = vextract.low.u32 %v357
        %v359 = vextract.high.u32 %v357
        %v360 = vmul.u32.u64.compose %v356, %v351
        %v361 = vextract.low.u32 %v360
        %v362 = vextract.high.u32 %v360
        %v363 = vmul.u32 %v356, %v347
        %v364 = vadd.s32 %v359, %v361
        %vm365 = vc.u32 %v359, %v361
        %v366 = vadd.s32 %v362, 1
        %v367 = vsel %vm365, %v366, %v362
        %v368 = vadd.s32 %v363, %v367
        %v369 = vadd.s32 %v368, 536870912
        %v370 = vshrl.u32 %v369, 30
        %v371 = vshll.u32 %v370, 30
        %v372 = vsub.s32 %v368, %v371
        %vm373 = vcmp.lt.s32.totalorder %v372, 0
        %v374 = vsub.s32 0, %v372
        %v375 = vsel %vm373, %v374, %v372
        %v376 = vclz %v375
        %v377 = vsub.s32 %v376, 2
        %vm378 = vcmp.gt.s32.totalorder 0, %v377
        %v379 = vsel %vm378, 0, %v377
        %v380 = vsub.s32 32, %v379
        %v381 = vshll.u32 %v372, %v379
        %v382 = vshrl.u32 %v364, %v380
        %v383 = vor.u32 %v381, %v382
        %v384 = vsub.s32 4294967266, %v379
        %v385 = vadd.s32 %v384, 127
        %v386 = vshll.u32 %v385, 23
        %v387 = vor.u32 4788187, %v386
        %v388 = vand.u32 2147483647, %v387
        %v390 = vcvt.s32.f32 %v383
        %v391 = vmul.f32 %v390, %v388
        %v392 = vxor.u32 %v391, 2147483648
        %v393 = vsel %vm310, %v392, %v391
        %v394 = vsub.s32 4, %v370
        %v395 = vsel %vm310, %v394, %v370
        %v396 = vsel %vm309, %v306, %v393
        %v397 = vsel %vm309, 0, %v395
        %v398 = vcosq.f32.pop %v396
        %v399 = vsinq.f32.pop %v396
        %vm400 = vweird.f32 %v306
        %v401 = vadd.s32 %v397, 3
        %v402 = vand.u32 %v401, 3
        %vm403 = vcmp.lt.s32.totalorder %v402, 2
        %vm404 = vcmp.eq.s32.totalorder %v402, 0
        %v405 = vxor.u32 %v399, 2147483648
        %v406 = vsel %vm404, %v398, %v405
        %vm407 = vcmp.eq.s32.totalorder %v402, 2
        %v408 = vxor.u32 %v398, 2147483648
        %v409 = vsel %vm407, %v408, %v399
        %v410 = vsel %vm403, %v406, %v409
        %v411 = vsel %vm400, nan, %v410
        %v412 = vand.u32 2147483647, %v307
        %vm413 = vcmp.le.f32.partialorder %v412, 0.7853982
        %vm414 = vcmp.lt.s32.totalorder %v307, 0
        %v415 = vand.u32 %v307, 2139095040
        %v416 = vshrl.u32 %v415, 23
        %v417 = vsub.s32 %v416, 127
        %v418 = vand.u32 2147483647, %v307
        %v419 = vand.u32 %v418, 8388607
        %v420 = vor.u32 %v419, 8388608
        %v421 = vsub.s32 0, %v420
        %v422 = vadd.s32 %v417, 1
        %vm423 = vcmp.gt.s32.totalorder %v422, 0
        %v424 = vsel %vm423, %v422, 0
        %v425 = vshrl.u32 %v424, 5
        %v426 = vand.u32 %v424, 31
        %v427 = vsub.s32 32, %v426
        %v428 = vshrl.u32 683565275, %v427
        %v429 = vshll.u32 683565275, %v426
        %v430 = vshrl.u32 2475754826, %v427
        %v431 = vor.u32 %v429, %v430
        %v432 = vshll.u32 2475754826, %v426
        %v433 = vshrl.u32 2131351028, %v427
        %v434 = vor.u32 %v432, %v433
        %v435 = vshll.u32 2131351028, %v426
        %v436 = vshrl.u32 2102212464, %v427
        %v437 = vor.u32 %v435, %v436
        %v438 = vshll.u32 2102212464, %v426
        %v439 = vshrl.u32 920167782, %v427
        %v440 = vor.u32 %v438, %v439
        %v441 = vshll.u32 920167782, %v426
        %v442 = vshrl.u32 1326507024, %v427
        %v443 = vor.u32 %v441, %v442
        %vm444 = vcmp.lt.s32.totalorder %v425, 1
        %vm445 = vcmp.lt.s32.totalorder %v425, 2
        %vm446 = vcmp.lt.s32.totalorder %v425, 3
        %vm447 = vcmp.lt.s32.totalorder %v425, 4
        %v448 = vsel %vm444, %v428, %v431
        %v449 = vsel %vm447, %v437, 2102212464
        %v450 = vsel %vm446, %v434, %v449
        %v451 = vsel %vm445, %v448, %v450
        %v452 = vsel %vm444, %v431, %v434
        %v453 = vsel %vm447, %v440, 920167782
        %v454 = vsel %vm446, %v437, %v453
        %v455 = vsel %vm445, %v452, %v454
        %v456 = vsel %vm444, %v434, %v437
        %v457 = vsel %vm447, %v443, 1326507024
        %v458 = vsel %vm446, %v440, %v457
        %v459 = vsel %vm445, %v456, %v458
        %v460 = vshll.u32 %v420, 8
        %v461 = vmul.u32.u64.compose %v460, %v459
        %v462 = vextract.low.u32 %v461
        %v463 = vextract.high.u32 %v461
        %v464 = vmul.u32.u64.compose %v460, %v455
        %v465 = vextract.low.u32 %v464
        %v466 = vextract.high.u32 %v464
        %v467 = vmul.u32 %v460, %v451
        %v468 = vadd.s32 %v463, %v465
        %vm469 = vc.u32 %v463, %v465
        %v470 = vadd.s32 %v466, 1
        %v471 = vsel %vm469, %v470, %v466
        %v472 = vadd.s32 %v467, %v471
        %v473 = vadd.s32 %v472, 536870912
        %v474 = vshrl.u32 %v473, 30
        %v475 = vshll.u32 %v474, 30
        %v476 = vsub.s32 %v472, %v475
        %vm477 = vcmp.lt.s32.totalorder %v476, 0
        %v478 = vsub.s32 0, %v476
        %v479 = vsel %vm477, %v478, %v476
        %v480 = vclz %v479
        %v481 = vsub.s32 %v480, 2
        %vm482 = vcmp.gt.s32.totalorder 0, %v481
        %v483 = vsel %vm482, 0, %v481
        %v484 = vsub.s32 32, %v483
        %v485 = vshll.u32 %v476, %v483
        %v486 = vshrl.u32 %v468, %v484
        %v487 = vor.u32 %v485, %v486
        %v488 = vsub.s32 4294967266, %v483
        %v489 = vadd.s32 %v488, 127
        %v490 = vshll.u32 %v489, 23
        %v491 = vor.u32 4788187, %v490
        %v492 = vand.u32 2147483647, %v491
        %v494 = vcvt.s32.f32 %v487
        %v495 = vmul.f32 %v494, %v492
        %v496 = vxor.u32 %v495, 2147483648
        %v497 = vsel %vm414, %v496, %v495
        %v498 = vsub.s32 4, %v474
        %v499 = vsel %vm414, %v498, %v474
        %v500 = vsel %vm413, %v307, %v497
        %v501 = vsel %vm413, 0, %v499
        %v502 = vcosq.f32.pop %v500
        %v503 = vsinq.f32.pop %v500
        %vm504 = vweird.f32 %v307
        %v505 = vadd.s32 %v501, 3
        %v506 = vand.u32 %v505, 3
        %vm507 = vcmp.lt.s32.totalorder %v506, 2
        %vm508 = vcmp.eq.s32.totalorder %v506, 0
        %v509 = vxor.u32 %v503, 2147483648
        %v510 = vsel %vm508, %v502, %v509
        %vm511 = vcmp.eq.s32.totalorder %v506, 2
        %v512 = vxor.u32 %v502, 2147483648
        %v513 = vsel %vm511, %v512, %v503
        %v514 = vsel %vm507, %v510, %v513
        %v515 = vsel %vm504, nan, %v514
        %v516 = vld [vmem:[%s226] sm:$0xff]
        %v517 = vld [vmem:[%s226 + $0x8] sm:$0xff]
        %v518 = vadd.f32 %v516, %v411
        %v519 = vadd.f32 %v517, %v515
        %v520 = vmul.f32 %v518, %v411
        %v521 = vmul.f32 %v519, %v515
        %522 = vst [vmem:[%s259] sm:$0xff] %v520
        %523 = vst [vmem:[%s259 + $0x8] sm:$0xff] %v521
        %v524 = vld [vmem:[%s2 + $0x8] sm:$0xff]
        %v525 = vld [vmem:[%s3 + $0x8] sm:$0xff]
        %v526 = vlaneseq
        %v527 = vshrl.u32 %v526, 7
        %v528 = vsub.s32 1, %v527
        %v529 = vrot.slane %v272, %v528
        %v530 = vlaneseq
        %v531 = vshrl.u32 %v530, 7
        %v532 = vsub.s32 5, %v531
        %v533 = vrot.slane %v272, %v532
        %v536 = vlaneseq
        %v537 = vshrl.u32 %v536, 7
        %v538 = vsub.s32 1, %v537
        %v539 = vrot.slane %v529, %v538
        %v540 = vlaneseq
        %v541 = vshrl.u32 %v540, 7
        %v542 = vsub.s32 1, %v541
        %v543 = vrot.slane %v533, %v542
        %545 = vset.pattern.permute.xlu0 0
        %546 = vperm.xlu0 %545, %v524
        %v547 = vpop.permute.xlu0 %546
        %v549 = vmul.f32 %v539, %v547
        %v550 = vmul.f32 %v543, %v547
        %552 = vset.pattern.permute.xlu0 0
        %553 = vperm.xlu0 %552, %v525
        %v554 = vpop.permute.xlu0 %553
        %v556 = vadd.f32 %v549, %v554
        %v557 = vadd.f32 %v550, %v554
        %v558 = vand.u32 2147483647, %v556
        %vm559 = vcmp.le.f32.partialorder %v558, 0.7853982
        %vm560 = vcmp.lt.s32.totalorder %v556, 0
        %v561 = vand.u32 %v556, 2139095040
        %v562 = vshrl.u32 %v561, 23
        %v563 = vsub.s32 %v562, 127
        %v564 = vand.u32 2147483647, %v556
        %v565 = vand.u32 %v564, 8388607
        %v566 = vor.u32 %v565, 8388608
        %v567 = vsub.s32 0, %v566
        %v568 = vadd.s32 %v563, 1
        %vm569 = vcmp.gt.s32.totalorder %v568, 0
        %v570 = vsel %vm569, %v568, 0
        %v571 = vshrl.u32 %v570, 5
        %v572 = vand.u32 %v570, 31
        %v573 = vsub.s32 32, %v572
        %v574 = vshrl.u32 683565275, %v573
        %v575 = vshll.u32 683565275, %v572
        %v576 = vshrl.u32 2475754826, %v573
        %v577 = vor.u32 %v575, %v576
        %v578 = vshll.u32 2475754826, %v572
        %v579 = vshrl.u32 2131351028, %v573
        %v580 = vor.u32 %v578, %v579
        %v581 = vshll.u32 2131351028, %v572
        %v582 = vshrl.u32 2102212464, %v573
        %v583 = vor.u32 %v581, %v582
        %v584 = vshll.u32 2102212464, %v572
        %v585 = vshrl.u32 920167782, %v573
        %v586 = vor.u32 %v584, %v585
        %v587 = vshll.u32 920167782, %v572
        %v588 = vshrl.u32 1326507024, %v573
        %v589 = vor.u32 %v587, %v588
        %vm590 = vcmp.lt.s32.totalorder %v571, 1
        %vm591 = vcmp.lt.s32.totalorder %v571, 2
        %vm592 = vcmp.lt.s32.totalorder %v571, 3
        %vm593 = vcmp.lt.s32.totalorder %v571, 4
        %v594 = vsel %vm590, %v574, %v577
        %v595 = vsel %vm593, %v583, 2102212464
        %v596 = vsel %vm592, %v580, %v595
        %v597 = vsel %vm591, %v594, %v596
        %v598 = vsel %vm590, %v577, %v580
        %v599 = vsel %vm593, %v586, 920167782
        %v600 = vsel %vm592, %v583, %v599
        %v601 = vsel %vm591, %v598, %v600
        %v602 = vsel %vm590, %v580, %v583
        %v603 = vsel %vm593, %v589, 1326507024
        %v604 = vsel %vm592, %v586, %v603
        %v605 = vsel %vm591, %v602, %v604
        %v606 = vshll.u32 %v566, 8
        %v607 = vmul.u32.u64.compose %v606, %v605
        %v608 = vextract.low.u32 %v607
        %v609 = vextract.high.u32 %v607
        %v610 = vmul.u32.u64.compose %v606, %v601
        %v611 = vextract.low.u32 %v610
        %v612 = vextract.high.u32 %v610
        %v613 = vmul.u32 %v606, %v597
        %v614 = vadd.s32 %v609, %v611
        %vm615 = vc.u32 %v609, %v611
        %v616 = vadd.s32 %v612, 1
        %v617 = vsel %vm615, %v616, %v612
        %v618 = vadd.s32 %v613, %v617
        %v619 = vadd.s32 %v618, 536870912
        %v620 = vshrl.u32 %v619, 30
        %v621 = vshll.u32 %v620, 30
        %v622 = vsub.s32 %v618, %v621
        %vm623 = vcmp.lt.s32.totalorder %v622, 0
        %v624 = vsub.s32 0, %v622
        %v625 = vsel %vm623, %v624, %v622
        %v626 = vclz %v625
        %v627 = vsub.s32 %v626, 2
        %vm628 = vcmp.gt.s32.totalorder 0, %v627
        %v629 = vsel %vm628, 0, %v627
        %v630 = vsub.s32 32, %v629
        %v631 = vshll.u32 %v622, %v629
        %v632 = vshrl.u32 %v614, %v630
        %v633 = vor.u32 %v631, %v632
        %v634 = vsub.s32 4294967266, %v629
        %v635 = vadd.s32 %v634, 127
        %v636 = vshll.u32 %v635, 23
        %v637 = vor.u32 4788187, %v636
        %v638 = vand.u32 2147483647, %v637
        %v640 = vcvt.s32.f32 %v633
        %v641 = vmul.f32 %v640, %v638
        %v642 = vxor.u32 %v641, 2147483648
        %v643 = vsel %vm560, %v642, %v641
        %v644 = vsub.s32 4, %v620
        %v645 = vsel %vm560, %v644, %v620
        %v646 = vsel %vm559, %v556, %v643
        %v647 = vsel %vm559, 0, %v645
        %v648 = vcosq.f32.pop %v646
        %v649 = vsinq.f32.pop %v646
        %vm650 = vweird.f32 %v556
        %v651 = vadd.s32 %v647, 3
        %v652 = vand.u32 %v651, 3
        %vm653 = vcmp.lt.s32.totalorder %v652, 2
        %vm654 = vcmp.eq.s32.totalorder %v652, 0
        %v655 = vxor.u32 %v649, 2147483648
        %v656 = vsel %vm654, %v648, %v655
        %vm657 = vcmp.eq.s32.totalorder %v652, 2
        %v658 = vxor.u32 %v648, 2147483648
        %v659 = vsel %vm657, %v658, %v649
        %v660 = vsel %vm653, %v656, %v659
        %v661 = vsel %vm650, nan, %v660
        %v662 = vand.u32 2147483647, %v557
        %vm663 = vcmp.le.f32.partialorder %v662, 0.7853982
        %vm664 = vcmp.lt.s32.totalorder %v557, 0
        %v665 = vand.u32 %v557, 2139095040
        %v666 = vshrl.u32 %v665, 23
        %v667 = vsub.s32 %v666, 127
        %v668 = vand.u32 2147483647, %v557
        %v669 = vand.u32 %v668, 8388607
        %v670 = vor.u32 %v669, 8388608
        %v671 = vsub.s32 0, %v670
        %v672 = vadd.s32 %v667, 1
        %vm673 = vcmp.gt.s32.totalorder %v672, 0
        %v674 = vsel %vm673, %v672, 0
        %v675 = vshrl.u32 %v674, 5
        %v676 = vand.u32 %v674, 31
        %v677 = vsub.s32 32, %v676
        %v678 = vshrl.u32 683565275, %v677
        %v679 = vshll.u32 683565275, %v676
        %v680 = vshrl.u32 2475754826, %v677
        %v681 = vor.u32 %v679, %v680
        %v682 = vshll.u32 2475754826, %v676
        %v683 = vshrl.u32 2131351028, %v677
        %v684 = vor.u32 %v682, %v683
        %v685 = vshll.u32 2131351028, %v676
        %v686 = vshrl.u32 2102212464, %v677
        %v687 = vor.u32 %v685, %v686
        %v688 = vshll.u32 2102212464, %v676
        %v689 = vshrl.u32 920167782, %v677
        %v690 = vor.u32 %v688, %v689
        %v691 = vshll.u32 920167782, %v676
        %v692 = vshrl.u32 1326507024, %v677
        %v693 = vor.u32 %v691, %v692
        %vm694 = vcmp.lt.s32.totalorder %v675, 1
        %vm695 = vcmp.lt.s32.totalorder %v675, 2
        %vm696 = vcmp.lt.s32.totalorder %v675, 3
        %vm697 = vcmp.lt.s32.totalorder %v675, 4
        %v698 = vsel %vm694, %v678, %v681
        %v699 = vsel %vm697, %v687, 2102212464
        %v700 = vsel %vm696, %v684, %v699
        %v701 = vsel %vm695, %v698, %v700
        %v702 = vsel %vm694, %v681, %v684
        %v703 = vsel %vm697, %v690, 920167782
        %v704 = vsel %vm696, %v687, %v703
        %v705 = vsel %vm695, %v702, %v704
        %v706 = vsel %vm694, %v684, %v687
        %v707 = vsel %vm697, %v693, 1326507024
        %v708 = vsel %vm696, %v690, %v707
        %v709 = vsel %vm695, %v706, %v708
        %v710 = vshll.u32 %v670, 8
        %v711 = vmul.u32.u64.compose %v710, %v709
        %v712 = vextract.low.u32 %v711
        %v713 = vextract.high.u32 %v711
        %v714 = vmul.u32.u64.compose %v710, %v705
        %v715 = vextract.low.u32 %v714
        %v716 = vextract.high.u32 %v714
        %v717 = vmul.u32 %v710, %v701
        %v718 = vadd.s32 %v713, %v715
        %vm719 = vc.u32 %v713, %v715
        %v720 = vadd.s32 %v716, 1
        %v721 = vsel %vm719, %v720, %v716
        %v722 = vadd.s32 %v717, %v721
        %v723 = vadd.s32 %v722, 536870912
        %v724 = vshrl.u32 %v723, 30
        %v725 = vshll.u32 %v724, 30
        %v726 = vsub.s32 %v722, %v725
        %vm727 = vcmp.lt.s32.totalorder %v726, 0
        %v728 = vsub.s32 0, %v726
        %v729 = vsel %vm727, %v728, %v726
        %v730 = vclz %v729
        %v731 = vsub.s32 %v730, 2
        %vm732 = vcmp.gt.s32.totalorder 0, %v731
        %v733 = vsel %vm732, 0, %v731
        %v734 = vsub.s32 32, %v733
        %v735 = vshll.u32 %v726, %v733
        %v736 = vshrl.u32 %v718, %v734
        %v737 = vor.u32 %v735, %v736
        %v738 = vsub.s32 4294967266, %v733
        %v739 = vadd.s32 %v738, 127
        %v740 = vshll.u32 %v739, 23
        %v741 = vor.u32 4788187, %v740
        %v742 = vand.u32 2147483647, %v741
        %v744 = vcvt.s32.f32 %v737
        %v745 = vmul.f32 %v744, %v742
        %v746 = vxor.u32 %v745, 2147483648
        %v747 = vsel %vm664, %v746, %v745
        %v748 = vsub.s32 4, %v724
        %v749 = vsel %vm664, %v748, %v724
        %v750 = vsel %vm663, %v557, %v747
        %v751 = vsel %vm663, 0, %v749
        %v752 = vcosq.f32.pop %v750
        %v753 = vsinq.f32.pop %v750
        %vm754 = vweird.f32 %v557
        %v755 = vadd.s32 %v751, 3
        %v756 = vand.u32 %v755, 3
        %vm757 = vcmp.lt.s32.totalorder %v756, 2
        %vm758 = vcmp.eq.s32.totalorder %v756, 0
        %v759 = vxor.u32 %v753, 2147483648
        %v760 = vsel %vm758, %v752, %v759
        %vm761 = vcmp.eq.s32.totalorder %v756, 2
        %v762 = vxor.u32 %v752, 2147483648
        %v763 = vsel %vm761, %v762, %v753
        %v764 = vsel %vm757, %v760, %v763
        %v765 = vsel %vm754, nan, %v764
        %v766 = vld [vmem:[%s226 + $0x10] sm:$0xff]
        %v767 = vld [vmem:[%s226 + $0x18] sm:$0xff]
        %v768 = vadd.f32 %v766, %v661
        %v769 = vadd.f32 %v767, %v765
        %v770 = vmul.f32 %v768, %v661
        %v771 = vmul.f32 %v769, %v765
        %772 = vst [vmem:[%s259 + $0x10] sm:$0xff] %v770
        %773 = vst [vmem:[%s259 + $0x18] sm:$0xff] %v771
        %v774 = vld [vmem:[%s2 + $0x10] sm:$0xff]
        %v775 = vld [vmem:[%s3 + $0x10] sm:$0xff]
        %v776 = vlaneseq
        %v777 = vshrl.u32 %v776, 7
        %v778 = vsub.s32 2, %v777
        %v779 = vrot.slane %v272, %v778
        %v780 = vlaneseq
        %v781 = vshrl.u32 %v780, 7
        %v782 = vsub.s32 6, %v781
        %v783 = vrot.slane %v272, %v782
        %v786 = vlaneseq
        %v787 = vshrl.u32 %v786, 7
        %v788 = vsub.s32 2, %v787
        %v789 = vrot.slane %v779, %v788
        %v790 = vlaneseq
        %v791 = vshrl.u32 %v790, 7
        %v792 = vsub.s32 2, %v791
        %v793 = vrot.slane %v783, %v792
        %795 = vset.pattern.permute.xlu0 0
        %796 = vperm.xlu0 %795, %v774
        %v797 = vpop.permute.xlu0 %796
        %v799 = vmul.f32 %v789, %v797
        %v800 = vmul.f32 %v793, %v797
        %802 = vset.pattern.permute.xlu0 0
        %803 = vperm.xlu0 %802, %v775
        %v804 = vpop.permute.xlu0 %803
        %v806 = vadd.f32 %v799, %v804
        %v807 = vadd.f32 %v800, %v804
        %v808 = vand.u32 2147483647, %v806
        %vm809 = vcmp.le.f32.partialorder %v808, 0.7853982
        %vm810 = vcmp.lt.s32.totalorder %v806, 0
        %v811 = vand.u32 %v806, 2139095040
        %v812 = vshrl.u32 %v811, 23
        %v813 = vsub.s32 %v812, 127
        %v814 = vand.u32 2147483647, %v806
        %v815 = vand.u32 %v814, 8388607
        %v816 = vor.u32 %v815, 8388608
        %v817 = vsub.s32 0, %v816
        %v818 = vadd.s32 %v813, 1
        %vm819 = vcmp.gt.s32.totalorder %v818, 0
        %v820 = vsel %vm819, %v818, 0
        %v821 = vshrl.u32 %v820, 5
        %v822 = vand.u32 %v820, 31
        %v823 = vsub.s32 32, %v822
        %v824 = vshrl.u32 683565275, %v823
        %v825 = vshll.u32 683565275, %v822
        %v826 = vshrl.u32 2475754826, %v823
        %v827 = vor.u32 %v825, %v826
        %v828 = vshll.u32 2475754826, %v822
        %v829 = vshrl.u32 2131351028, %v823
        %v830 = vor.u32 %v828, %v829
        %v831 = vshll.u32 2131351028, %v822
        %v832 = vshrl.u32 2102212464, %v823
        %v833 = vor.u32 %v831, %v832
        %v834 = vshll.u32 2102212464, %v822
        %v835 = vshrl.u32 920167782, %v823
        %v836 = vor.u32 %v834, %v835
        %v837 = vshll.u32 920167782, %v822
        %v838 = vshrl.u32 1326507024, %v823
        %v839 = vor.u32 %v837, %v838
        %vm840 = vcmp.lt.s32.totalorder %v821, 1
        %vm841 = vcmp.lt.s32.totalorder %v821, 2
        %vm842 = vcmp.lt.s32.totalorder %v821, 3
        %vm843 = vcmp.lt.s32.totalorder %v821, 4
        %v844 = vsel %vm840, %v824, %v827
        %v845 = vsel %vm843, %v833, 2102212464
        %v846 = vsel %vm842, %v830, %v845
        %v847 = vsel %vm841, %v844, %v846
        %v848 = vsel %vm840, %v827, %v830
        %v849 = vsel %vm843, %v836, 920167782
        %v850 = vsel %vm842, %v833, %v849
        %v851 = vsel %vm841, %v848, %v850
        %v852 = vsel %vm840, %v830, %v833
        %v853 = vsel %vm843, %v839, 1326507024
        %v854 = vsel %vm842, %v836, %v853
        %v855 = vsel %vm841, %v852, %v854
        %v856 = vshll.u32 %v816, 8
        %v857 = vmul.u32.u64.compose %v856, %v855
        %v858 = vextract.low.u32 %v857
        %v859 = vextract.high.u32 %v857
        %v860 = vmul.u32.u64.compose %v856, %v851
        %v861 = vextract.low.u32 %v860
        %v862 = vextract.high.u32 %v860
        %v863 = vmul.u32 %v856, %v847
        %v864 = vadd.s32 %v859, %v861
        %vm865 = vc.u32 %v859, %v861
        %v866 = vadd.s32 %v862, 1
        %v867 = vsel %vm865, %v866, %v862
        %v868 = vadd.s32 %v863, %v867
        %v869 = vadd.s32 %v868, 536870912
        %v870 = vshrl.u32 %v869, 30
        %v871 = vshll.u32 %v870, 30
        %v872 = vsub.s32 %v868, %v871
        %vm873 = vcmp.lt.s32.totalorder %v872, 0
        %v874 = vsub.s32 0, %v872
        %v875 = vsel %vm873, %v874, %v872
        %v876 = vclz %v875
        %v877 = vsub.s32 %v876, 2
        %vm878 = vcmp.gt.s32.totalorder 0, %v877
        %v879 = vsel %vm878, 0, %v877
        %v880 = vsub.s32 32, %v879
        %v881 = vshll.u32 %v872, %v879
        %v882 = vshrl.u32 %v864, %v880
        %v883 = vor.u32 %v881, %v882
        %v884 = vsub.s32 4294967266, %v879
        %v885 = vadd.s32 %v884, 127
        %v886 = vshll.u32 %v885, 23
        %v887 = vor.u32 4788187, %v886
        %v888 = vand.u32 2147483647, %v887
        %v890 = vcvt.s32.f32 %v883
        %v891 = vmul.f32 %v890, %v888
        %v892 = vxor.u32 %v891, 2147483648
        %v893 = vsel %vm810, %v892, %v891
        %v894 = vsub.s32 4, %v870
        %v895 = vsel %vm810, %v894, %v870
        %v896 = vsel %vm809, %v806, %v893
        %v897 = vsel %vm809, 0, %v895
        %v898 = vcosq.f32.pop %v896
        %v899 = vsinq.f32.pop %v896
        %vm900 = vweird.f32 %v806
        %v901 = vadd.s32 %v897, 3
        %v902 = vand.u32 %v901, 3
        %vm903 = vcmp.lt.s32.totalorder %v902, 2
        %vm904 = vcmp.eq.s32.totalorder %v902, 0
        %v905 = vxor.u32 %v899, 2147483648
        %v906 = vsel %vm904, %v898, %v905
        %vm907 = vcmp.eq.s32.totalorder %v902, 2
        %v908 = vxor.u32 %v898, 2147483648
        %v909 = vsel %vm907, %v908, %v899
        %v910 = vsel %vm903, %v906, %v909
        %v911 = vsel %vm900, nan, %v910
        %v912 = vand.u32 2147483647, %v807
        %vm913 = vcmp.le.f32.partialorder %v912, 0.7853982
        %vm914 = vcmp.lt.s32.totalorder %v807, 0
        %v915 = vand.u32 %v807, 2139095040
        %v916 = vshrl.u32 %v915, 23
        %v917 = vsub.s32 %v916, 127
        %v918 = vand.u32 2147483647, %v807
        %v919 = vand.u32 %v918, 8388607
        %v920 = vor.u32 %v919, 8388608
        %v921 = vsub.s32 0, %v920
        %v922 = vadd.s32 %v917, 1
        %vm923 = vcmp.gt.s32.totalorder %v922, 0
        %v924 = vsel %vm923, %v922, 0
        %v925 = vshrl.u32 %v924, 5
        %v926 = vand.u32 %v924, 31
        %v927 = vsub.s32 32, %v926
        %v928 = vshrl.u32 683565275, %v927
        %v929 = vshll.u32 683565275, %v926
        %v930 = vshrl.u32 2475754826, %v927
        %v931 = vor.u32 %v929, %v930
        %v932 = vshll.u32 2475754826, %v926
        %v933 = vshrl.u32 2131351028, %v927
        %v934 = vor.u32 %v932, %v933
        %v935 = vshll.u32 2131351028, %v926
        %v936 = vshrl.u32 2102212464, %v927
        %v937 = vor.u32 %v935, %v936
        %v938 = vshll.u32 2102212464, %v926
        %v939 = vshrl.u32 920167782, %v927
        %v940 = vor.u32 %v938, %v939
        %v941 = vshll.u32 920167782, %v926
        %v942 = vshrl.u32 1326507024, %v927
        %v943 = vor.u32 %v941, %v942
        %vm944 = vcmp.lt.s32.totalorder %v925, 1
        %vm945 = vcmp.lt.s32.totalorder %v925, 2
        %vm946 = vcmp.lt.s32.totalorder %v925, 3
        %vm947 = vcmp.lt.s32.totalorder %v925, 4
        %v948 = vsel %vm944, %v928, %v931
        %v949 = vsel %vm947, %v937, 2102212464
        %v950 = vsel %vm946, %v934, %v949
        %v951 = vsel %vm945, %v948, %v950
        %v952 = vsel %vm944, %v931, %v934
        %v953 = vsel %vm947, %v940, 920167782
        %v954 = vsel %vm946, %v937, %v953
        %v955 = vsel %vm945, %v952, %v954
        %v956 = vsel %vm944, %v934, %v937
        %v957 = vsel %vm947, %v943, 1326507024
        %v958 = vsel %vm946, %v940, %v957
        %v959 = vsel %vm945, %v956, %v958
        %v960 = vshll.u32 %v920, 8
        %v961 = vmul.u32.u64.compose %v960, %v959
        %v962 = vextract.low.u32 %v961
        %v963 = vextract.high.u32 %v961
        %v964 = vmul.u32.u64.compose %v960, %v955
        %v965 = vextract.low.u32 %v964
        %v966 = vextract.high.u32 %v964
        %v967 = vmul.u32 %v960, %v951
        %v968 = vadd.s32 %v963, %v965
        %vm969 = vc.u32 %v963, %v965
        %v970 = vadd.s32 %v966, 1
        %v971 = vsel %vm969, %v970, %v966
        %v972 = vadd.s32 %v967, %v971
        %v973 = vadd.s32 %v972, 536870912
        %v974 = vshrl.u32 %v973, 30
        %v975 = vshll.u32 %v974, 30
        %v976 = vsub.s32 %v972, %v975
        %vm977 = vcmp.lt.s32.totalorder %v976, 0
        %v978 = vsub.s32 0, %v976
        %v979 = vsel %vm977, %v978, %v976
        %v980 = vclz %v979
        %v981 = vsub.s32 %v980, 2
        %vm982 = vcmp.gt.s32.totalorder 0, %v981
        %v983 = vsel %vm982, 0, %v981
        %v984 = vsub.s32 32, %v983
        %v985 = vshll.u32 %v976, %v983
        %v986 = vshrl.u32 %v968, %v984
        %v987 = vor.u32 %v985, %v986
        %v988 = vsub.s32 4294967266, %v983
        %v989 = vadd.s32 %v988, 127
        %v990 = vshll.u32 %v989, 23
        %v991 = vor.u32 4788187, %v990
        %v992 = vand.u32 2147483647, %v991
        %v994 = vcvt.s32.f32 %v987
        %v995 = vmul.f32 %v994, %v992
        %v996 = vxor.u32 %v995, 2147483648
        %v997 = vsel %vm914, %v996, %v995
        %v998 = vsub.s32 4, %v974
        %v999 = vsel %vm914, %v998, %v974
        %v1000 = vsel %vm913, %v807, %v997
        %v1001 = vsel %vm913, 0, %v999
        %v1002 = vcosq.f32.pop %v1000
        %v1003 = vsinq.f32.pop %v1000
        %vm1004 = vweird.f32 %v807
        %v1005 = vadd.s32 %v1001, 3
        %v1006 = vand.u32 %v1005, 3
        %vm1007 = vcmp.lt.s32.totalorder %v1006, 2
        %vm1008 = vcmp.eq.s32.totalorder %v1006, 0
        %v1009 = vxor.u32 %v1003, 2147483648
        %v1010 = vsel %vm1008, %v1002, %v1009
        %vm1011 = vcmp.eq.s32.totalorder %v1006, 2
        %v1012 = vxor.u32 %v1002, 2147483648
        %v1013 = vsel %vm1011, %v1012, %v1003
        %v1014 = vsel %vm1007, %v1010, %v1013
        %v1015 = vsel %vm1004, nan, %v1014
        %v1016 = vld [vmem:[%s226 + $0x20] sm:$0xff]
        %v1017 = vld [vmem:[%s226 + $0x28] sm:$0xff]
        %v1018 = vadd.f32 %v1016, %v911
        %v1019 = vadd.f32 %v1017, %v1015
        %v1020 = vmul.f32 %v1018, %v911
        %v1021 = vmul.f32 %v1019, %v1015
        %1022 = vst [vmem:[%s259 + $0x20] sm:$0xff] %v1020
        %1023 = vst [vmem:[%s259 + $0x28] sm:$0xff] %v1021
        %s1024 = sand.u32 %s141, 1
        %s1025 = scalar_lea.sflag [#allocation4], %s1024
        %s1026 = sand.u32 %s141, 1
        %s1027 = smul.addr %s1026, 48
        %s1028 = scalar_lea.vmem [#allocation5], %s1027
        // Predicated region
        $region41: #{tpu_custom_call.1} parent=35 // pred_check
          %p1029 = pneg %p151
        $region42: #{tpu_custom_call.1} parent=35 // pred_check_branch
          %1031 = sbr.rel (%p1029) target = $region44
        $region43: #{tpu_custom_call.1} parent=35 // pred_region
          %s1032 = smul.u32 2, %s26
          %s1034 = ssub.s32 768, 768
          %1035 = vsyncadd %s1025, %s1034
          %s1036 = smul.addr %s25, 6
          %s1037 = sadd.s32 %s1032, %s1036
          %s1038 = smul.addr %s1037, 128
          %s1039 = scalar_lea.hbm %s4, %s1038
          %s1040 = sshll.u32 %s1028, 4
          %s1041 = int_to_ptr.vmem [resolvable:$true] %s1040
          %1046 = dma.vmem_to_hbm [thread:$0]  %s1041, 768, %s1039, %s1025, 256, 256, 16
        $region44: #{tpu_custom_call.1} parent=35 // pred_fallthru
          _
      $region36: #{tpu_custom_call.1} parent=5 // pred_fallthru
        _
      %p1047 = scmp.le.s32.totalorder 2, %s16
      // Predicated region
      $region45: #{tpu_custom_call.1} parent=5 // pred_check
        %p1048 = pneg %p1047
      $region46: #{tpu_custom_call.1} parent=5 // pred_check_branch
        %1050 = sbr.rel (%p1048) target = $region48
      $region47: #{tpu_custom_call.1} parent=5 // pred_region
        %s1051 = ssub.s32 %s16, 2
        // Predicated region
        $region49: #{tpu_custom_call.1} parent=47 // pred_check
          %p1052 = pneg %p157
        $region50: #{tpu_custom_call.1} parent=47 // pred_check_branch
          %1054 = sbr.rel (%p1052) target = $region52
        $region51: #{tpu_custom_call.1} parent=47 // pred_region
          %s1055 = sand.u32 %s142, 1
          %s1056 = scalar_lea.sflag [#allocation4], %s1055
          %s1057 = sand.u32 %s142, 1
          %s1058 = smul.addr %s1057, 48
          %s1059 = scalar_lea.vmem [#allocation5], %s1058
          %1060 = dma.done %s1056, 768
        $region52: #{tpu_custom_call.1} parent=47 // pred_fallthru
          _
      $region48: #{tpu_custom_call.1} parent=5 // pred_fallthru
        _
    $region6: #{tpu_custom_call.1} parent=1 // loop_footer
      %s20 = sadd.s32 1, %s16
    $region7: #{tpu_custom_call.1} parent=1 // loop_footer_branch
      %15 = sbr.rel target = $region3
    $region8: #{tpu_custom_call.1} parent=1 // loop_exit
      _
    %1061 = vsyncpa [#allocation3], 1
    %s1062 = scalar_lea.sflag [#allocation3], 1
    %1063 = vsyncpa %s1062, 1
    %1064 = vsyncpa [#allocation4], 1
    %s1065 = scalar_lea.sflag [#allocation4], 1
    %1066 = vsyncpa %s1065, 1

</llo_original>
